<compile_context>
chip_gen: v6e
topology: v6e:2x2x1
jax: 0.10.0
libtpu: 0.0.40
codegen_flags: <defaults>
</compile_context>

<pallas_src>
import functools

import jax
import jax.numpy as jnp
from jax.experimental import pallas as pl
from jax.experimental.pallas import tpu as pltpu


def policy_network_kernel(x_ref, w1_ref, b1_ref, w2_ref, b2_ref, o_ref):
    num_input = x_ref.shape[1]
    num_actions = o_ref.shape[1]

    # x streamed from HBM as bf16; upcast once to f32 for the VPU math.
    x = x_ref[...].astype(jnp.float32)          # (TB, num_input)
    w1 = w1_ref[...]                            # (num_input, H) f32, resident
    b1 = b1_ref[...]                            # (1, H) f32, resident

    # ---- Layer 1: Linear(num_input -> H) + ReLU ----------------------------
    # K = num_input (4) is tiny: the MXU systolic array would be >96% idle on
    # this contraction, so do it as num_input broadcast multiply-adds (VPU).
    h = b1                                      # (1, H) -> broadcasts up
    for k in range(num_input):
        h = h + x[:, k:k + 1] * w1[k:k + 1, :]  # (TB,1)*(1,H) -> (TB,H)
    h = jnp.maximum(h, 0.0)

    # ---- Layer 2: Linear(H -> num_actions) ---------------------------------
    # K = H = 128: use the MXU; bf16 operands, f32 accumulation.
    z = jnp.dot(h.astype(jnp.bfloat16),
                w2_ref[...].astype(jnp.bfloat16),
                preferred_element_type=jnp.float32) + b2_ref[...]  # (TB, A) f32

    # ---- LogSoftmax over the action dim (PyTorch LogSoftmax on 2-D => dim=1)
    if num_actions == 2:
        # Closed form for two columns: avoids cross-lane (XLU) reductions over
        # a 2-wide (126/128-lane-padded) last dim. Numerically = logsumexp.
        z0 = z[:, 0:1]
        z1 = z[:, 1:2]
        m = jnp.maximum(z0, z1)
        lse = m + jnp.log(1.0 + jnp.exp(-jnp.abs(z0 - z1)))        # (TB, 1)
        o_ref[...] = (z - lse).astype(o_ref.dtype)
    else:
        m = jnp.max(z, axis=-1, keepdims=True)
        s = z - m
        lse = jnp.log(jnp.sum(jnp.exp(s), axis=-1, keepdims=True))
        o_ref[...] = (s - lse).astype(o_ref.dtype)


def _round_up(n: int, m: int) -> int:
    return (n + m - 1) // m * m


@functools.partial(jax.jit, static_argnames=("block_batch",))
def policy_network(x, w1, b1, w2, b2, *, block_batch=1024):
    """x: (B, num_input); w1: (num_input, H); b1: (1, H); w2: (H, A); b2: (1, A)."""
    B, num_input = x.shape
    H = w1.shape[1]
    A = w2.shape[1]

    # Stream x as bf16: halves the dominant HBM->VMEM DMA traffic. Weights and
    # biases stay f32 (tiny, VMEM-resident across all grid steps).
    x_bf16 = x.astype(jnp.bfloat16)

    # Batch tile: multiple of 16 (bf16 sublane pack); clamp to the padded batch
    # so small batches don't over-pad. Pad the batch so the grid divides evenly
    # (zero rows are valid for log-softmax and sliced off afterwards).
    tb = min(block_batch, _round_up(B, 16))
    b_pad = _round_up(B, tb)
    if b_pad != B:
        x_bf16 = jnp.pad(x_bf16, ((0, b_pad - B), (0, 0)))

    grid = (b_pad // tb,)

    out = pl.pallas_call(
        policy_network_kernel,
        out_shape=jax.ShapeDtypeStruct((b_pad, A), jnp.float32),
        grid_spec=pltpu.PrefetchScalarGridSpec(
            num_scalar_prefetch=0,
            grid=grid,
            in_specs=[
                pl.BlockSpec((tb, num_input), lambda i: (i, 0)),   # x: streams
                pl.BlockSpec((num_input, H), lambda i: (0, 0)),    # w1: resident
                pl.BlockSpec((1, H), lambda i: (0, 0)),            # b1: resident
                pl.BlockSpec((H, A), lambda i: (0, 0)),            # w2: resident
                pl.BlockSpec((1, A), lambda i: (0, 0)),            # b2: resident
            ],
            out_specs=pl.BlockSpec((tb, A), lambda i: (i, 0)),
        ),
        compiler_params=pltpu.CompilerParams(
            dimension_semantics=("parallel",),   # 2-TC sharding on v7x
        ),
    )(x_bf16, w1, b1, w2, b2)

    return out[:B] if b_pad != B else out


def init_params(key, num_input=4, num_hidden=128, num_actions=2):
    # Deterministic init mimicking PyTorch Linear default (uniform +/- 1/sqrt(fan_in)).
    k1, k2, k3, k4 = jax.random.split(key, 4)
    lim1 = 1.0 / jnp.sqrt(jnp.float32(num_input))
    lim2 = 1.0 / jnp.sqrt(jnp.float32(num_hidden))
    w1 = jax.random.uniform(k1, (num_input, num_hidden), jnp.float32, -lim1, lim1)
    b1 = jax.random.uniform(k2, (1, num_hidden), jnp.float32, -lim1, lim1)
    w2 = jax.random.uniform(k3, (num_hidden, num_actions), jnp.float32, -lim2, lim2)
    b2 = jax.random.uniform(k4, (1, num_actions), jnp.float32, -lim2, lim2)
    return w1, b1, w2, b2


if __name__ == "__main__":
    # TODO(synk): at this toy size a standalone pallas_call is launch-overhead
    # dominated; in a real RL step fuse this head with sampling/advantage work.
    key = jax.random.PRNGKey(0)
    kx, kp = jax.random.split(key)

    batch, num_input, num_hidden, num_actions = 8, 4, 128, 2
    x = jax.random.normal(kx, (batch, num_input), jnp.float32)
    w1, b1, w2, b2 = init_params(kp, num_input, num_hidden, num_actions)

    out = policy_network(x, w1, b1, w2, b2)
    jax.block_until_ready(out)

    # Reference in plain JAX, mirroring the kernel's bf16 streaming / MXU casts.
    xb = x.astype(jnp.bfloat16).astype(jnp.float32)
    h_ref = jnp.maximum(xb @ w1 + b1, 0.0)
    z_ref = jnp.dot(h_ref.astype(jnp.bfloat16), w2.astype(jnp.bfloat16),
                    preferred_element_type=jnp.float32) + b2
    ref = jax.nn.log_softmax(z_ref, axis=-1)

    assert out.shape == (batch, num_actions)
    assert jnp.allclose(out, ref, atol=1e-4, rtol=1e-4), float(
        jnp.max(jnp.abs(out - ref)))

    print("KERNEL_OK")
</pallas_src>

<mosaic_0001>
module attributes {stable_mosaic.version = 11 : i64} {
  func.func @policy_network_kernel(%arg0: i32, %arg1: memref<16x4xbf16, #tpu.memory_space<vmem>>, %arg2: memref<4x128xf32, #tpu.memory_space<vmem>>, %arg3: memref<1x128xf32, #tpu.memory_space<vmem>>, %arg4: memref<128x2xf32, #tpu.memory_space<vmem>>, %arg5: memref<1x2xf32, #tpu.memory_space<vmem>>, %arg6: memref<16x2xf32, #tpu.memory_space<vmem>>) attributes {dimension_semantics = [#tpu.dimension_semantics<parallel>], iteration_bounds = array<i64: 1>, scalar_prefetch = 0 : i64, scratch_operands = 0 : i64, tpu.core_type = #tpu.core_type<tc>, window_params = [{transform_indices = @transform_0, window_bounds = array<i64: 16, 4>}, {pipeline_mode = #tpu.pipeline_mode<synchronous>, transform_indices = @transform_1, window_bounds = array<i64: 4, 128>}, {pipeline_mode = #tpu.pipeline_mode<synchronous>, transform_indices = @transform_2, window_bounds = array<i64: 1, 128>}, {pipeline_mode = #tpu.pipeline_mode<synchronous>, transform_indices = @transform_3, window_bounds = array<i64: 128, 2>}, {pipeline_mode = #tpu.pipeline_mode<synchronous>, transform_indices = @transform_4, window_bounds = array<i64: 1, 2>}, {transform_indices = @transform_5, window_bounds = array<i64: 16, 2>}]} {
    %c0 = arith.constant 0 : index
    %c0_0 = arith.constant 0 : index
    %0 = vector.load %arg1[%c0, %c0_0] : memref<16x4xbf16, #tpu.memory_space<vmem>>, vector<16x4xbf16>
    %1 = arith.extf %0 : vector<16x4xbf16> to vector<16x4xf32>
    %c0_1 = arith.constant 0 : index
    %c0_2 = arith.constant 0 : index
    %2 = vector.load %arg2[%c0_1, %c0_2] : memref<4x128xf32, #tpu.memory_space<vmem>>, vector<4x128xf32>
    %c0_3 = arith.constant 0 : index
    %c0_4 = arith.constant 0 : index
    %3 = vector.load %arg3[%c0_3, %c0_4] : memref<1x128xf32, #tpu.memory_space<vmem>>, vector<1x128xf32>
    %4 = vector.extract_strided_slice %1 {offsets = [0, 0], sizes = [16, 1], strides = [1, 1]} : vector<16x4xf32> to vector<16x1xf32>
    %5 = vector.extract_strided_slice %2 {offsets = [0, 0], sizes = [1, 128], strides = [1, 1]} : vector<4x128xf32> to vector<1x128xf32>
    %6 = vector.broadcast %4 : vector<16x1xf32> to vector<16x128xf32>
    %7 = vector.broadcast %5 : vector<1x128xf32> to vector<16x128xf32>
    %8 = arith.mulf %6, %7 : vector<16x128xf32>
    %9 = vector.broadcast %3 : vector<1x128xf32> to vector<16x128xf32>
    %10 = arith.addf %9, %8 : vector<16x128xf32>
    %11 = vector.extract_strided_slice %1 {offsets = [0, 1], sizes = [16, 1], strides = [1, 1]} : vector<16x4xf32> to vector<16x1xf32>
    %12 = vector.extract_strided_slice %2 {offsets = [1, 0], sizes = [1, 128], strides = [1, 1]} : vector<4x128xf32> to vector<1x128xf32>
    %13 = vector.broadcast %11 : vector<16x1xf32> to vector<16x128xf32>
    %14 = vector.broadcast %12 : vector<1x128xf32> to vector<16x128xf32>
    %15 = arith.mulf %13, %14 : vector<16x128xf32>
    %16 = arith.addf %10, %15 : vector<16x128xf32>
    %17 = vector.extract_strided_slice %1 {offsets = [0, 2], sizes = [16, 1], strides = [1, 1]} : vector<16x4xf32> to vector<16x1xf32>
    %18 = vector.extract_strided_slice %2 {offsets = [2, 0], sizes = [1, 128], strides = [1, 1]} : vector<4x128xf32> to vector<1x128xf32>
    %19 = vector.broadcast %17 : vector<16x1xf32> to vector<16x128xf32>
    %20 = vector.broadcast %18 : vector<1x128xf32> to vector<16x128xf32>
    %21 = arith.mulf %19, %20 : vector<16x128xf32>
    %22 = arith.addf %16, %21 : vector<16x128xf32>
    %23 = vector.extract_strided_slice %1 {offsets = [0, 3], sizes = [16, 1], strides = [1, 1]} : vector<16x4xf32> to vector<16x1xf32>
    %24 = vector.extract_strided_slice %2 {offsets = [3, 0], sizes = [1, 128], strides = [1, 1]} : vector<4x128xf32> to vector<1x128xf32>
    %25 = vector.broadcast %23 : vector<16x1xf32> to vector<16x128xf32>
    %26 = vector.broadcast %24 : vector<1x128xf32> to vector<16x128xf32>
    %27 = arith.mulf %25, %26 : vector<16x128xf32>
    %28 = arith.addf %22, %27 : vector<16x128xf32>
    %cst = arith.constant 0.000000e+00 : f32
    %29 = vector.broadcast %cst : f32 to vector<16x128xf32>
    %30 = arith.maximumf %28, %29 : vector<16x128xf32>
    %31 = arith.truncf %30 : vector<16x128xf32> to vector<16x128xbf16>
    %c0_5 = arith.constant 0 : index
    %c0_6 = arith.constant 0 : index
    %32 = vector.load %arg4[%c0_5, %c0_6] : memref<128x2xf32, #tpu.memory_space<vmem>>, vector<128x2xf32>
    %33 = arith.truncf %32 : vector<128x2xf32> to vector<128x2xbf16>
    %cst_7 = arith.constant dense<0.000000e+00> : vector<16x2xf32>
    %34 = tpu.matmul %31, %33, %cst_7 {dimension_numbers = #tpu.dot_dimension_numbers<[1], [0], [0], [1], [0, 0, 1, 1], [], []>} : vector<16x128xbf16>, vector<128x2xbf16>, vector<16x2xf32> -> vector<16x2xf32>
    %c0_8 = arith.constant 0 : index
    %c0_9 = arith.constant 0 : index
    %35 = vector.load %arg5[%c0_8, %c0_9] : memref<1x2xf32, #tpu.memory_space<vmem>>, vector<1x2xf32>
    %36 = vector.broadcast %35 : vector<1x2xf32> to vector<16x2xf32>
    %37 = arith.addf %34, %36 : vector<16x2xf32>
    %38 = vector.extract_strided_slice %37 {offsets = [0, 0], sizes = [16, 1], strides = [1, 1]} : vector<16x2xf32> to vector<16x1xf32>
    %39 = vector.extract_strided_slice %37 {offsets = [0, 1], sizes = [16, 1], strides = [1, 1]} : vector<16x2xf32> to vector<16x1xf32>
    %40 = arith.maximumf %38, %39 : vector<16x1xf32>
    %41 = arith.subf %38, %39 : vector<16x1xf32>
    %42 = math.absf %41 : vector<16x1xf32>
    %cst_10 = arith.constant 0.000000e+00 : f32
    %43 = vector.broadcast %cst_10 : f32 to vector<16x1xf32>
    %44 = arith.subf %43, %42 : vector<16x1xf32>
    %45 = math.exp %44 : vector<16x1xf32>
    %cst_11 = arith.constant 1.000000e+00 : f32
    %46 = vector.broadcast %cst_11 : f32 to vector<16x1xf32>
    %47 = arith.addf %46, %45 : vector<16x1xf32>
    %48 = math.log %47 : vector<16x1xf32>
    %49 = arith.addf %40, %48 : vector<16x1xf32>
    %50 = vector.broadcast %49 : vector<16x1xf32> to vector<16x2xf32>
    %51 = arith.subf %37, %50 : vector<16x2xf32>
    %c0_12 = arith.constant 0 : index
    %c0_13 = arith.constant 0 : index
    %52 = vector.load %arg6[%c0_12, %c0_13] : memref<16x2xf32, #tpu.memory_space<vmem>>, vector<16x2xf32>
    tpu.vector_store %arg6[%c0_12, %c0_13], %51 {strides = array<i32>} : memref<16x2xf32, #tpu.memory_space<vmem>>, vector<16x2xf32>,
    return
  }
  func.func @transform_0(%arg0: i32) -> (i32, i32) {
    %c0_i32 = arith.constant 0 : i32
    %c0_i32_0 = arith.constant 0 : i32
    return %arg0, %c0_i32 : i32, i32
  }
  func.func @transform_1(%arg0: i32) -> (i32, i32) {
    %c0_i32 = arith.constant 0 : i32
    %c0_i32_0 = arith.constant 0 : i32
    %c0_i32_1 = arith.constant 0 : i32
    return %c0_i32, %c0_i32_0 : i32, i32
  }
  func.func @transform_2(%arg0: i32) -> (i32, i32) {
    %c0_i32 = arith.constant 0 : i32
    %c0_i32_0 = arith.constant 0 : i32
    %c0_i32_1 = arith.constant 0 : i32
    return %c0_i32, %c0_i32_0 : i32, i32
  }
  func.func @transform_3(%arg0: i32) -> (i32, i32) {
    %c0_i32 = arith.constant 0 : i32
    %c0_i32_0 = arith.constant 0 : i32
    %c0_i32_1 = arith.constant 0 : i32
    return %c0_i32, %c0_i32_0 : i32, i32
  }
  func.func @transform_4(%arg0: i32) -> (i32, i32) {
    %c0_i32 = arith.constant 0 : i32
    %c0_i32_0 = arith.constant 0 : i32
    %c0_i32_1 = arith.constant 0 : i32
    return %c0_i32, %c0_i32_0 : i32, i32
  }
  func.func @transform_5(%arg0: i32) -> (i32, i32) {
    %c0_i32 = arith.constant 0 : i32
    %c0_i32_0 = arith.constant 0 : i32
    return %arg0, %c0_i32 : i32, i32
  }
}

</mosaic_0001>

<llo_original>
// kernel: policy_network.1
$region0: #{policy_network.1}
  #allocation0 [shape = 'u32[]', space=smem, size = 0x4, offset = 0x4, fixed_abs, tag = 'smem constant byte address 0x4 - core index']
  #allocation1 [shape = 'u32[144,128]{1,0:T(1,128)}', space=vmem, size = 0x12000, scoped, tag = 'internal scratch']
  %s0 = inlined_call_operand.vmem [shape: bf16[16,4], index: 0, kind: input, shape index: {}]
  %s1 = inlined_call_operand.vmem [shape: f32[4,128], index: 1, kind: input, shape index: {}]
  %s2 = inlined_call_operand.vmem [shape: f32[1,128], index: 2, kind: input, shape index: {}]
  %s3 = inlined_call_operand.vmem [shape: f32[128,2], index: 3, kind: input, shape index: {}]
  %s4 = inlined_call_operand.vmem [shape: f32[1,2], index: 4, kind: input, shape index: {}]
  %s5 = inlined_call_operand.vmem [shape: f32[16,2], index: 5, kind: output, shape index: {}]
  %s6 = sld [smem:[#allocation0]]
  $region30: #{policy_network.1} parent=0
    _
  %s8 = ssub.s32 1, %s6
  %s9 = scalar_select 0, %s8, %s6
  // Predicated region
  $region2: #{policy_network.1} parent=0 // pred_check
    _
  $region3: #{policy_network.1} parent=0 // pred_check_branch
    %11 = sbr.rel (0) target = $region5
  $region4: #{policy_network.1} parent=0 // pred_region
    _
  $region5: #{policy_network.1} parent=0 // pred_fallthru
    _
  // Predicated region
  $region6: #{policy_network.1} parent=0 // pred_check
    _
  $region7: #{policy_network.1} parent=0 // pred_check_branch
    %13 = sbr.rel (0) target = $region9
  $region8: #{policy_network.1} parent=0 // pred_region
    _
  $region9: #{policy_network.1} parent=0 // pred_fallthru
    _
  // Predicated region
  $region10: #{policy_network.1} parent=0 // pred_check
    _
  $region11: #{policy_network.1} parent=0 // pred_check_branch
    %15 = sbr.rel (0) target = $region13
  $region12: #{policy_network.1} parent=0 // pred_region
    _
  $region13: #{policy_network.1} parent=0 // pred_fallthru
    _
  // Predicated region
  $region14: #{policy_network.1} parent=0 // pred_check
    _
  $region15: #{policy_network.1} parent=0 // pred_check_branch
    %17 = sbr.rel (0) target = $region17
  $region16: #{policy_network.1} parent=0 // pred_region
    _
  $region17: #{policy_network.1} parent=0 // pred_fallthru
    _
  // Predicated region
  $region18: #{policy_network.1} parent=0 // pred_check
    _
  $region19: #{policy_network.1} parent=0 // pred_check_branch
    %19 = sbr.rel (0) target = $region21
  $region20: #{policy_network.1} parent=0 // pred_region
    _
  $region21: #{policy_network.1} parent=0 // pred_fallthru
    _
  %v21 = vld [vmem:[%s0] sm:$0xf]
  %v22 = vld [vmem:[%s0 + $0x4] sm:$0xf]
  %v23 = vunpack.c.l.bf16 %v21
  %v24 = vunpack.c.l.bf16 %v22
  %v25 = vld [vmem:[%s1] sm:$0xf]
  %v26 = vld [vmem:[%s2] sm:$0x1]
  %28 = vset.pattern.permute.xlu0 0
  %29 = vperm.xlu0 %28, %v23
  %v30 = vpop.permute.xlu0 %29
  %33 = vset.pattern.permute.xlu0 0
  %34 = vperm.xlu0 %33, %v24
  %v35 = vpop.permute.xlu0 %34
  %v37 = vlaneseq
  %v38 = vshrl.u32 %v37, 7
  %v39 = vsub.s32 0, %v38
  %v40 = vrot.slane %v25, %v39
  %v41 = vmul.f32 %v30, %v40
  %v42 = vmul.f32 %v35, %v40
  %v44 = vlaneseq
  %v45 = vshrl.u32 %v44, 7
  %v46 = vsub.s32 0, %v45
  %v47 = vrot.slane %v26, %v46
  %v49 = vadd.f32 %v47, %v41
  %v50 = vadd.f32 %v47, %v42
  %51 = vset.pattern.permute.xlu0 1
  %52 = vperm.xlu0 %51, %v23
  %v53 = vpop.permute.xlu0 %52
  %55 = vset.pattern.permute.xlu0 1
  %56 = vperm.xlu0 %55, %v24
  %v57 = vpop.permute.xlu0 %56
  %v59 = vlaneseq
  %v60 = vshrl.u32 %v59, 7
  %v61 = vsub.s32 1, %v60
  %v62 = vrot.slane %v25, %v61
  %v63 = vmul.f32 %v53, %v62
  %v64 = vmul.f32 %v57, %v62
  %v65 = vadd.f32 %v49, %v63
  %v66 = vadd.f32 %v50, %v64
  %67 = vset.pattern.permute.xlu0 2
  %68 = vperm.xlu0 %67, %v23
  %v69 = vpop.permute.xlu0 %68
  %71 = vset.pattern.permute.xlu0 2
  %72 = vperm.xlu0 %71, %v24
  %v73 = vpop.permute.xlu0 %72
  %v75 = vlaneseq
  %v76 = vshrl.u32 %v75, 7
  %v77 = vsub.s32 2, %v76
  %v78 = vrot.slane %v25, %v77
  %v79 = vmul.f32 %v69, %v78
  %v80 = vmul.f32 %v73, %v78
  %v81 = vadd.f32 %v65, %v79
  %v82 = vadd.f32 %v66, %v80
  %83 = vset.pattern.permute.xlu0 3
  %84 = vperm.xlu0 %83, %v23
  %v85 = vpop.permute.xlu0 %84
  %87 = vset.pattern.permute.xlu0 3
  %88 = vperm.xlu0 %87, %v24
  %v89 = vpop.permute.xlu0 %88
  %v91 = vlaneseq
  %v92 = vshrl.u32 %v91, 7
  %v93 = vsub.s32 3, %v92
  %v94 = vrot.slane %v25, %v93
  %v95 = vmul.f32 %v85, %v94
  %v96 = vmul.f32 %v89, %v94
  %v97 = vadd.f32 %v81, %v95
  %v98 = vadd.f32 %v82, %v96
  %v99 = vmax.f32 %v97, 0.0
  %v100 = vmax.f32 %v98, 0.0
  %v101 = vpack.c.bf16 %v100, %v99
  %v102 = vld [vmem:[%s3] sm:$0xff]
  %v103 = vld [vmem:[%s3 + $0x8] sm:$0xff]
  %v104 = vld [vmem:[%s3 + $0x10] sm:$0xff]
  %v105 = vld [vmem:[%s3 + $0x18] sm:$0xff]
  %v106 = vld [vmem:[%s3 + $0x20] sm:$0xff]
  %v107 = vld [vmem:[%s3 + $0x28] sm:$0xff]
  %v108 = vld [vmem:[%s3 + $0x30] sm:$0xff]
  %v109 = vld [vmem:[%s3 + $0x38] sm:$0xff]
  %v110 = vld [vmem:[%s3 + $0x40] sm:$0xff]
  %v111 = vld [vmem:[%s3 + $0x48] sm:$0xff]
  %v112 = vld [vmem:[%s3 + $0x50] sm:$0xff]
  %v113 = vld [vmem:[%s3 + $0x58] sm:$0xff]
  %v114 = vld [vmem:[%s3 + $0x60] sm:$0xff]
  %v115 = vld [vmem:[%s3 + $0x68] sm:$0xff]
  %v116 = vld [vmem:[%s3 + $0x70] sm:$0xff]
  %v117 = vld [vmem:[%s3 + $0x78] sm:$0xff]
  %v118 = vpack.c.bf16 %v103, %v102
  %v119 = vpack.c.bf16 %v105, %v104
  %v120 = vpack.c.bf16 %v107, %v106
  %v121 = vpack.c.bf16 %v109, %v108
  %v122 = vpack.c.bf16 %v111, %v110
  %v123 = vpack.c.bf16 %v113, %v112
  %v124 = vpack.c.bf16 %v115, %v114
  %v125 = vpack.c.bf16 %v117, %v116
  %v126 = vld [vmem:[%s4] sm:$0x1]
  %v128 = vlaneseq
  %v129 = vshrl.u32 %v128, 7
  %v130 = vsub.s32 0, %v129
  %v131 = vrot.slane %v126, %v130
  %133 = vmatprep.subr.bf16.mxu0 0
  %134 = vmatpush1.bf16.msra.mxu0 %v125
  %135 = vmatprep.subr.bf16.mxu0 0
  %136 = vmatpush1.bf16.msra.mxu0 %v124
  %137 = vmatprep.subr.bf16.mxu0 0
  %138 = vmatpush1.bf16.msra.mxu0 %v123
  %139 = vmatprep.subr.bf16.mxu0 0
  %140 = vmatpush1.bf16.msra.mxu0 %v122
  %141 = vmatprep.subr.bf16.mxu0 0
  %142 = vmatpush1.bf16.msra.mxu0 %v121
  %143 = vmatprep.subr.bf16.mxu0 0
  %144 = vmatpush1.bf16.msra.mxu0 %v120
  %145 = vmatprep.subr.bf16.mxu0 0
  %146 = vmatpush1.bf16.msra.mxu0 %v119
  %147 = vmatprep.subr.bf16.mxu0 0
  %148 = vmatpush1.bf16.msra.mxu0 %v118
  %149 = vmatprep.subr.bf16.mxu0 0
  %150 = vmatpush2.bf16.msra.mxu0 0
  %151 = vmatprep.subr.bf16.mxu0 0
  %152 = vmatpush2.bf16.msra.mxu0 0
  %153 = vmatprep.subr.bf16.mxu0 0
  %154 = vmatpush2.bf16.msra.mxu0 0
  %155 = vmatprep.subr.bf16.mxu0 0
  %156 = vmatpush2.bf16.msra.mxu0 0
  %157 = vmatprep.subr.bf16.mxu0 0
  %158 = vmatpush2.bf16.msra.mxu0 0
  %159 = vmatprep.subr.bf16.mxu0 0
  %160 = vmatpush2.bf16.msra.mxu0 0
  %161 = vmatprep.subr.bf16.mxu0 0
  %162 = vmatpush2.bf16.msra.mxu0 0
  %163 = vmatprep.subr.bf16.mxu0 0
  %164 = vmatpush2.bf16.msra.mxu0 0
  %165 = vmatprep.mubr.bf16.mxu0 0
  %166 = vmatmul.mubr.bf16.gmra.mxu0 %v101
  %v167 = vpop.f32.mrf.mxu0
  %v168 = vadd.f32 %v131, %v167
  %v169 = vpop.f32.mrf.mxu0
  %v170 = vpop.f32.mrf.mxu0
  %v171 = vadd.f32 %v131, %v170
  %v172 = vpop.f32.mrf.mxu0
  %173 = vdwg.mxu0
  %176 = vrot.lane.b32.xlu0 %v168, 127
  %v177 = vpop.permute.xlu0 %176
  %178 = vrot.lane.b32.xlu0 %v171, 127
  %v179 = vpop.permute.xlu0 %178
  %v182 = vmax.f32 %v168, %v177
  %v183 = vmax.f32 %v171, %v179
  %v184 = vsub.f32 %v168, %v177
  %v185 = vsub.f32 %v171, %v179
  %v186 = vand.u32 2147483647, %v184
  %v187 = vand.u32 2147483647, %v185
  %v188 = vsub.f32 0.0, %v186
  %v189 = vsub.f32 0.0, %v187
  %v190 = vmul.f32 %v188, 1.442695
  %v191 = vpow.pop %v190
  %v192 = vmul.f32 %v189, 1.442695
  %v193 = vpow.pop %v192
  %v194 = vadd.f32 %v191, 1.0
  %v195 = vadd.f32 %v193, 1.0
  %v196 = vlog2.pop %v194
  %v197 = vmul.f32 %v196, 0.6931472
  %v198 = vlog2.pop %v195
  %v199 = vmul.f32 %v198, 0.6931472
  %v200 = vadd.f32 %v182, %v197
  %v201 = vadd.f32 %v183, %v199
  %203 = vset.pattern.permute.xlu0 0
  %204 = vperm.xlu0 %203, %v200
  %v205 = vpop.permute.xlu0 %204
  %208 = vset.pattern.permute.xlu0 0
  %209 = vperm.xlu0 %208, %v201
  %v210 = vpop.permute.xlu0 %209
  %v212 = vsub.f32 %v168, %v205
  %v213 = vsub.f32 %v171, %v210
  %vm214 = vcmask 15360
  %215 = vst.msk [vmem:[%s5] sm:$0xff] %vm214, %v212
  %216 = vst.msk [vmem:[%s5 + $0x8] sm:$0xff] %vm214, %v213
  // Predicated region
  $region22: #{policy_network.1} parent=0 // pred_check
    _
  $region23: #{policy_network.1} parent=0 // pred_check_branch
    %218 = sbr.rel (0) target = $region25
  $region24: #{policy_network.1} parent=0 // pred_region
    _
  $region25: #{policy_network.1} parent=0 // pred_fallthru
    _
  // Predicated region
  $region26: #{policy_network.1} parent=0 // pred_check
    _
  $region27: #{policy_network.1} parent=0 // pred_check_branch
    %220 = sbr.rel (0) target = $region29
  $region28: #{policy_network.1} parent=0 // pred_region
    _
  $region29: #{policy_network.1} parent=0 // pred_fallthru
    _

</llo_original>
